<compile_context>
chip_gen: v6e
topology: v6e:2x2x1
jax: 0.10.0
libtpu: 0.0.40
codegen_flags: <defaults>
</compile_context>

<pallas_src>
import functools

import jax
import jax.numpy as jnp
from jax import lax
from jax.experimental import pallas as pl
from jax.experimental.pallas import tpu as pltpu


def _round_up(x: int, m: int) -> int:
    return ((x + m - 1) // m) * m


def _vmem_budget_bytes() -> int:
    """~75% of physical VMEM: 96 MiB on 128-MiB chips (v5e/v6e), 48 MiB on
    64-MiB v7x.  Conservative 48 MiB fallback if the query fails."""
    cap = 64 << 20
    try:
        info = pltpu.get_tpu_info()
        cap = int(getattr(info, "vmem_capacity_bytes", cap)) or cap
    except Exception:
        pass
    return int(cap * 3 // 4)


def _pick_tile_nt(nt, c_in, c_out_p, d4p, s_pad, budget_bytes):
    """Largest NT tile (multiple of 8, <=1024) that fits the VMEM budget,
    preferring one that divides NT exactly (no padding / post-slice pass)."""
    # Resident per-batch slabs + weights (double-buffered by the pipeline).
    fixed = (2 * (d4p * s_pad + s_pad * c_out_p)        # x_cache^T, x_value
             + 2 * (c_in * d4p + d4p)) * 4              # Wq^T, bq
    # Per-query-row bytes: double-buffered q/out/aff pipeline tiles plus the
    # live in-kernel f32 temporaries (x_query, scores/exp/aff/shifted, out).
    per_row = (2 * (c_in + c_out_p + s_pad)
               + (d4p + 4 * s_pad + c_out_p)) * 4
    avail = max(budget_bytes - fixed, per_row * 8)
    max_tile = min(1024, avail // per_row, _round_up(nt, 8))
    max_tile = max(8, (max_tile // 8) * 8)
    if nt % 8 == 0:
        for t in range(max_tile, max(8, max_tile // 2) - 1, -8):
            if nt % t == 0:
                return t
    return max_tile


# ---------------------------------------------------------------------------
# Kernel 1: once-per-batch cache / value projection (hoisted out of the
# attention kernel).  d4p is a multiple of 128, so the split of the fused
# [Wc|Wv] result is lane-aligned (no XLU relayout).  x_cache is written
# pre-transposed so the attention matmul needs no per-tile transpose.
# ---------------------------------------------------------------------------
def _cache_proj_kernel(c_ref, wcv_ref, bcv_ref, xct_ref, xv_ref, *, d4p):
    c = c_ref[0]                                                   # (S_pad, C)
    xcv = jnp.dot(c, wcv_ref[...],
                  preferred_element_type=jnp.float32) + bcv_ref[...]
    xct_ref[0] = xcv[:, :d4p].T                                    # (D4p, S_pad)
    xv_ref[0] = xcv[:, d4p:]                                       # (S_pad, Cp)


# ---------------------------------------------------------------------------
# Kernel 2: per-(batch, NT-tile) attention.  All last dims are 128-padded so
# every load/store on the big streams is lane-dense.
# ---------------------------------------------------------------------------
def _attn_kernel(q_ref, xct_ref, xv_ref, wq_ref, bq_ref, out_ref, aff_ref, *,
                 shrink_thres, s_valid, s_pad):
    q = q_ref[0]                                                   # (TNT, C)
    x_query = jnp.dot(q, wq_ref[...],
                      preferred_element_type=jnp.float32) + bq_ref[...]

    # affinity = x_query @ x_cache^T : plain (M,K)@(K,N) dot, K = D4p aligned.
    s = jnp.dot(x_query, xct_ref[0],
                preferred_element_type=jnp.float32)                # (TNT, S_pad)
    if s_valid != s_pad:
        # mask the zero-padded cache slots so softmax mass does not leak there
        col = lax.broadcasted_iota(jnp.int32, s.shape, 1)
        s = jnp.where(col < s_valid, s, jnp.float32(-jnp.inf))

    # softmax: one exact divide on the (TNT,1) row sum, then broadcast multiply
    s = s - jnp.max(s, axis=-1, keepdims=True)
    e = jnp.exp(s)
    aff = e * (1.0 / jnp.sum(e, axis=-1, keepdims=True))

    if shrink_thres > 0:
        # hard_shrink_relu: relu(a - lambd) * a / (|a - lambd| + eps)
        lam = jnp.float32(shrink_thres)
        eps = jnp.float32(1e-12)
        shifted = aff - lam
        denom = jnp.abs(shifted) + eps
        inv = pl.reciprocal(denom, approx=True)
        inv = inv * (2.0 - denom * inv)      # one Newton step -> ~f32-exact
        aff = jnp.maximum(shifted, 0.0) * aff * inv
        # F.normalize(p=1, dim=-1): aff >= 0 after relu-shrink, so no abs().
        l1 = jnp.maximum(jnp.sum(aff, axis=-1, keepdims=True), jnp.float32(1e-12))
        aff = aff * (1.0 / l1)

    out = jnp.dot(aff, xv_ref[0], preferred_element_type=jnp.float32)

    out_ref[0] = out.astype(out_ref.dtype)    # lane-dense (Cp = k*128) store
    aff_ref[0] = aff.astype(aff_ref.dtype)    # lane-dense (S_pad = k*128) store


def en_normal_module(query, cache, params, *, shrink_thres=0.0025):
    """query: (B*n, T, C) ; cache: (B, S, C).
    Returns (out (B*n, T, C), affinity (B, n*T, S))."""
    Bn, T, C = query.shape
    B, S, _ = cache.shape
    n = Bn // B
    NT = n * T
    D4 = C // 4

    # lane-dense (128-padded) sizes
    D4p = _round_up(D4, 128)
    Cp = _round_up(C, 128)
    Sp = _round_up(S, 128)

    budget = _vmem_budget_bytes()
    f32 = jnp.float32

    # '(b n) t c -> b (n t) c'
    q = query.reshape(B, n, T, C).reshape(B, NT, C).astype(f32)

    TILE_NT = _pick_tile_nt(NT, C, Cp, D4p, Sp, budget)
    NTT = -(-NT // TILE_NT)
    NT_pad = NTT * TILE_NT
    if NT_pad != NT:
        q = jnp.pad(q, ((0, 0), (0, NT_pad - NT), (0, 0)))

    cache_p = cache.astype(f32)
    if Sp != S:
        cache_p = jnp.pad(cache_p, ((0, 0), (0, Sp - S), (0, 0)))

    # Weights pre-transposed to (in, out); zero-padded to lane-aligned widths
    # (zero columns contribute exactly 0 to every contraction -> numerically exact).
    wq_t = jnp.pad(params["wq"].T.astype(f32), ((0, 0), (0, D4p - D4)))
    bq = jnp.pad(params["bq"].astype(f32), (0, D4p - D4)).reshape(1, D4p)
    wc_t = jnp.pad(params["wc"].T.astype(f32), ((0, 0), (0, D4p - D4)))
    wv_t = jnp.pad(params["wv"].T.astype(f32), ((0, 0), (0, Cp - C)))
    wcv_t = jnp.concatenate([wc_t, wv_t], axis=1)                  # (C, D4p + Cp)
    bc = jnp.pad(params["bc"].astype(f32), (0, D4p - D4))
    bv = jnp.pad(params["bv"].astype(f32), (0, Cp - C))
    bcv = jnp.concatenate([bc, bv]).reshape(1, D4p + Cp)

    # ---- kernel 1: per-batch cache / value projection -----------------------
    x_cache_t, x_value = pl.pallas_call(
        functools.partial(_cache_proj_kernel, d4p=D4p),
        out_shape=(
            jax.ShapeDtypeStruct((B, D4p, Sp), jnp.float32),
            jax.ShapeDtypeStruct((B, Sp, Cp), jnp.float32),
        ),
        grid_spec=pltpu.PrefetchScalarGridSpec(
            num_scalar_prefetch=0,
            grid=(B,),
            in_specs=[
                pl.BlockSpec((1, Sp, C), lambda b: (b, 0, 0)),        # cache slab
                pl.BlockSpec((C, D4p + Cp), lambda b: (0, 0)),        # [Wc|Wv]^T
                pl.BlockSpec((1, D4p + Cp), lambda b: (0, 0)),        # [bc|bv]
            ],
            out_specs=[
                pl.BlockSpec((1, D4p, Sp), lambda b: (b, 0, 0)),      # x_cache^T
                pl.BlockSpec((1, Sp, Cp), lambda b: (b, 0, 0)),       # x_value
            ],
        ),
        compiler_params=pltpu.CompilerParams(
            dimension_semantics=("parallel",),
            vmem_limit_bytes=budget,
        ),
    )(cache_p, wcv_t, bcv)

    # ---- kernel 2: attention (both grid axes parallel) -----------------------
    kernel = functools.partial(_attn_kernel, shrink_thres=float(shrink_thres),
                               s_valid=S, s_pad=Sp)
    out, affinity = pl.pallas_call(
        kernel,
        out_shape=(
            jax.ShapeDtypeStruct((B, NT_pad, Cp), jnp.float32),
            jax.ShapeDtypeStruct((B, NT_pad, Sp), jnp.float32),
        ),
        grid_spec=pltpu.PrefetchScalarGridSpec(
            num_scalar_prefetch=0,
            grid=(B, NTT),
            in_specs=[
                pl.BlockSpec((1, TILE_NT, C), lambda b, i: (b, i, 0)),  # query tile
                pl.BlockSpec((1, D4p, Sp), lambda b, i: (b, 0, 0)),     # x_cache^T
                pl.BlockSpec((1, Sp, Cp), lambda b, i: (b, 0, 0)),      # x_value
                pl.BlockSpec((C, D4p), lambda b, i: (0, 0)),            # Wq^T
                pl.BlockSpec((1, D4p), lambda b, i: (0, 0)),            # bq
            ],
            out_specs=[
                pl.BlockSpec((1, TILE_NT, Cp), lambda b, i: (b, i, 0)),
                pl.BlockSpec((1, TILE_NT, Sp), lambda b, i: (b, i, 0)),
            ],
        ),
        compiler_params=pltpu.CompilerParams(
            dimension_semantics=("parallel", "parallel"),
            vmem_limit_bytes=budget,
        ),
    )(q, x_cache_t, x_value, wq_t, bq)

    # strip lane/row padding
    out = out[:, :NT, :C]
    affinity = affinity[:, :NT, :S]

    # 'b (n t) c -> (b n) t c'
    out = out.reshape(B, n, T, C).reshape(Bn, T, C)
    return out, affinity


def _reference(query, cache, params, *, shrink_thres=0.0025):
    Bn, T, C = query.shape
    B, S, _ = cache.shape
    n = Bn // B
    q = query.reshape(B, n, T, C).reshape(B, n * T, C)
    xq = q @ params["wq"].T + params["bq"]
    xc = cache @ params["wc"].T + params["bc"]
    xv = cache @ params["wv"].T + params["bv"]
    aff = jnp.einsum("bqd,bkd->bqk", xq, xc)
    aff = jax.nn.softmax(aff, axis=-1)
    if shrink_thres > 0:
        shifted = aff - shrink_thres
        aff = jnp.maximum(shifted, 0.0) * aff / (jnp.abs(shifted) + 1e-12)
        aff = aff / jnp.maximum(jnp.sum(jnp.abs(aff), axis=-1, keepdims=True), 1e-12)
    out = aff @ xv
    out = out.reshape(B, n, T, C).reshape(Bn, T, C)
    return out, aff


if __name__ == "__main__":
    # Small shapes: dim C=32 (dim//4=8), B=2 batches, n=2 crops, T=8 snippets,
    # S=16 cache slots.
    B, n, T, C, S = 2, 2, 8, 32, 16
    D4 = C // 4
    key = jax.random.PRNGKey(0)
    k1, k2, k3, k4, k5, k6, k7, k8 = jax.random.split(key, 8)

    query = jax.random.normal(k1, (B * n, T, C), dtype=jnp.float32)
    cache = jax.random.normal(k2, (B, S, C), dtype=jnp.float32)

    # nn.Linear-shaped params: W is (out, in), b is (out,)
    params = {
        "wq": jax.random.normal(k3, (D4, C), dtype=jnp.float32) * (1.0 / C ** 0.5),
        "bq": jax.random.normal(k4, (D4,), dtype=jnp.float32) * 0.01,
        "wc": jax.random.normal(k5, (D4, C), dtype=jnp.float32) * (1.0 / C ** 0.5),
        "bc": jax.random.normal(k6, (D4,), dtype=jnp.float32) * 0.01,
        "wv": jax.random.normal(k7, (C, C), dtype=jnp.float32) * (1.0 / C ** 0.5),
        "bv": jax.random.normal(k8, (C,), dtype=jnp.float32) * 0.01,
    }

    out, affinity = en_normal_module(query, cache, params, shrink_thres=0.0025)
    out = jax.block_until_ready(out)
    affinity = jax.block_until_ready(affinity)

    ref_out, ref_aff = _reference(query, cache, params, shrink_thres=0.0025)
    assert out.shape == (B * n, T, C)
    assert affinity.shape == (B, n * T, S)
    assert jnp.allclose(out, ref_out, atol=1e-4, rtol=1e-4)
    assert jnp.allclose(affinity, ref_aff, atol=1e-5, rtol=1e-5)

    print("KERNEL_OK")
</pallas_src>

<mosaic_0001>
module attributes {stable_mosaic.version = 11 : i64} {
  func.func @_cache_proj_kernel(%arg0: i32, %arg1: memref<1x128x32xf32, #tpu.memory_space<vmem>>, %arg2: memref<32x256xf32, #tpu.memory_space<vmem>>, %arg3: memref<1x256xf32, #tpu.memory_space<vmem>>, %arg4: memref<1x128x128xf32, #tpu.memory_space<vmem>>, %arg5: memref<1x128x128xf32, #tpu.memory_space<vmem>>) attributes {dimension_semantics = [#tpu.dimension_semantics<parallel>], iteration_bounds = array<i64: 2>, scalar_prefetch = 0 : i64, scratch_operands = 0 : i64, tpu.core_type = #tpu.core_type<tc>, window_params = [{transform_indices = @transform_0, window_bounds = array<i64: 1, 128, 32>}, {pipeline_mode = #tpu.pipeline_mode<synchronous>, transform_indices = @transform_1, window_bounds = array<i64: 32, 256>}, {pipeline_mode = #tpu.pipeline_mode<synchronous>, transform_indices = @transform_2, window_bounds = array<i64: 1, 256>}, {transform_indices = @transform_3, window_bounds = array<i64: 1, 128, 128>}, {transform_indices = @transform_4, window_bounds = array<i64: 1, 128, 128>}]} {
    %c0 = arith.constant 0 : index
    %c0_0 = arith.constant 0 : index
    %c0_1 = arith.constant 0 : index
    %0 = vector.load %arg1[%c0, %c0_0, %c0_1] : memref<1x128x32xf32, #tpu.memory_space<vmem>>, vector<1x128x32xf32>
    %1 = vector.shape_cast %0 : vector<1x128x32xf32> to vector<128x32xf32>
    %c0_2 = arith.constant 0 : index
    %c0_3 = arith.constant 0 : index
    %2 = vector.load %arg2[%c0_2, %c0_3] : memref<32x256xf32, #tpu.memory_space<vmem>>, vector<32x256xf32>
    %cst = arith.constant dense<0.000000e+00> : vector<128x256xf32>
    %3 = tpu.matmul %1, %2, %cst {dimension_numbers = #tpu.dot_dimension_numbers<[1], [0], [0], [1], [0, 0, 1, 1], [], []>} : vector<128x32xf32>, vector<32x256xf32>, vector<128x256xf32> -> vector<128x256xf32>
    %c0_4 = arith.constant 0 : index
    %c0_5 = arith.constant 0 : index
    %4 = vector.load %arg3[%c0_4, %c0_5] : memref<1x256xf32, #tpu.memory_space<vmem>>, vector<1x256xf32>
    %5 = vector.broadcast %4 : vector<1x256xf32> to vector<128x256xf32>
    %6 = arith.addf %3, %5 : vector<128x256xf32>
    %7 = vector.extract_strided_slice %6 {offsets = [0, 0], sizes = [128, 128], strides = [1, 1]} : vector<128x256xf32> to vector<128x128xf32>
    %8 = tpu.transpose %7, [1, 0] : vector<128x128xf32> -> vector<128x128xf32>
    %c0_6 = arith.constant 0 : index
    %c0_7 = arith.constant 0 : index
    %c0_8 = arith.constant 0 : index
    %9 = vector.load %arg4[%c0_6, %c0_7, %c0_8] : memref<1x128x128xf32, #tpu.memory_space<vmem>>, vector<1x128x128xf32>
    %10 = vector.shape_cast %9 : vector<1x128x128xf32> to vector<128x128xf32>
    %11 = vector.shape_cast %8 : vector<128x128xf32> to vector<1x128x128xf32>
    tpu.vector_store %arg4[%c0_6, %c0_7, %c0_8], %11 {strides = array<i32>} : memref<1x128x128xf32, #tpu.memory_space<vmem>>, vector<1x128x128xf32>,
    %12 = vector.extract_strided_slice %6 {offsets = [0, 128], sizes = [128, 128], strides = [1, 1]} : vector<128x256xf32> to vector<128x128xf32>
    %c0_9 = arith.constant 0 : index
    %c0_10 = arith.constant 0 : index
    %c0_11 = arith.constant 0 : index
    %13 = vector.load %arg5[%c0_9, %c0_10, %c0_11] : memref<1x128x128xf32, #tpu.memory_space<vmem>>, vector<1x128x128xf32>
    %14 = vector.shape_cast %13 : vector<1x128x128xf32> to vector<128x128xf32>
    %15 = vector.shape_cast %12 : vector<128x128xf32> to vector<1x128x128xf32>
    tpu.vector_store %arg5[%c0_9, %c0_10, %c0_11], %15 {strides = array<i32>} : memref<1x128x128xf32, #tpu.memory_space<vmem>>, vector<1x128x128xf32>,
    return
  }
  func.func @transform_0(%arg0: i32) -> (i32, i32, i32) {
    %c0_i32 = arith.constant 0 : i32
    %c0_i32_0 = arith.constant 0 : i32
    %c0_i32_1 = arith.constant 0 : i32
    return %arg0, %c0_i32, %c0_i32_0 : i32, i32, i32
  }
  func.func @transform_1(%arg0: i32) -> (i32, i32) {
    %c0_i32 = arith.constant 0 : i32
    %c0_i32_0 = arith.constant 0 : i32
    %c0_i32_1 = arith.constant 0 : i32
    return %c0_i32, %c0_i32_0 : i32, i32
  }
  func.func @transform_2(%arg0: i32) -> (i32, i32) {
    %c0_i32 = arith.constant 0 : i32
    %c0_i32_0 = arith.constant 0 : i32
    %c0_i32_1 = arith.constant 0 : i32
    return %c0_i32, %c0_i32_0 : i32, i32
  }
  func.func @transform_3(%arg0: i32) -> (i32, i32, i32) {
    %c0_i32 = arith.constant 0 : i32
    %c0_i32_0 = arith.constant 0 : i32
    %c0_i32_1 = arith.constant 0 : i32
    return %arg0, %c0_i32, %c0_i32_0 : i32, i32, i32
  }
  func.func @transform_4(%arg0: i32) -> (i32, i32, i32) {
    %c0_i32 = arith.constant 0 : i32
    %c0_i32_0 = arith.constant 0 : i32
    %c0_i32_1 = arith.constant 0 : i32
    return %arg0, %c0_i32, %c0_i32_0 : i32, i32, i32
  }
}

</mosaic_0001>

<llo_original>
// kernel: tpu_custom_call.1
$region0: #{tpu_custom_call.1}
  #allocation0 [shape = 'u32[]', space=smem, size = 0x4, offset = 0x4, fixed_abs, tag = 'smem constant byte address 0x4 - core index']
  #allocation1 [shape = 'u32[144,128]{1,0:T(1,128)}', space=vmem, size = 0x12000, scoped, tag = 'internal scratch']
  %s0 = inlined_call_operand.vmem [shape: f32[2,128,32], index: 0, kind: input, shape index: {}]
  %s1 = inlined_call_operand.vmem [shape: f32[32,256], index: 1, kind: input, shape index: {}]
  %s2 = inlined_call_operand.vmem [shape: f32[1,256], index: 2, kind: input, shape index: {}]
  %s3 = inlined_call_operand.hbm [shape: f32[2,128,128], index: 3, kind: output, shape index: {0}]
  %s4 = inlined_call_operand.hbm [shape: f32[2,128,128], index: 4, kind: output, shape index: {1}]
  %5 = xla_tuple %s3, %s4
  %s6 = sld [smem:[#allocation0]]
  $region53: #{tpu_custom_call.1} parent=0
    _
  %s8 = ssub.s32 1, %s6
  %s9 = scalar_select 0, %s8, %s6
  $region1: #{tpu_custom_call.1} parent=0
    #allocation2 [shape = 'u8[131072]{0}', space=vmem, size = 0x20000, scoped, tag = 'output window, operand 0']
    #allocation3 [shape = 's32[2]{0}', space=sflag, size = 0x8, scoped, tag = 'scoped memory for tpu_custom_call.1']
    #allocation4 [shape = 'u8[131072]{0}', space=vmem, size = 0x20000, scoped, tag = 'output window, operand 1']
    #allocation5 [shape = 's32[2]{0}', space=sflag, size = 0x8, scoped, tag = 'scoped memory for tpu_custom_call.1']
    %10 = vsyncpa [#allocation3], 0
    %s11 = scalar_lea.sflag [#allocation3], 1
    %12 = vsyncpa %s11, 0
    %13 = vsyncpa [#allocation5], 0
    %s14 = scalar_lea.sflag [#allocation5], 1
    %15 = vsyncpa %s14, 0
    loop: start=0, step=1, limit=4
    $region2: #{tpu_custom_call.1} parent=1 // loop_pre_header
      _
    $region3: #{tpu_custom_call.1} parent=1 // loop_header
      %s17 = sphi 0, %s21
      %p18 = scmp.ge.s32.totalorder %s17, 4
      %s27 = sphi 0, %s29
      %s30 = sphi 0, %s27
      %s31 = sphi 0, %s30
      %s47 = sphi 0, %s31
      %s51 = sphi 0, %s51
      %s53 = sphi 0, %s51
      %s54 = sphi 0, %s53
      %s68 = sphi 0, %s54
      %s72 = sphi 0, %s72
      %s74 = sphi 0, %s72
      %s75 = sphi 0, %s74
      %s89 = sphi 0, %s75
      %s95 = sphi 0, %s97
      %s98 = sphi 0, %s95
      %s99 = sphi 0, %s98
      %s115 = sphi 0, %s99
      %s121 = sphi 0, %s123
      %s124 = sphi 0, %s121
      %s125 = sphi 0, %s124
      %s141 = sphi 0, %s125
    $region4: #{tpu_custom_call.1} parent=1 // loop_header_branch
      %20 = sbr.rel (%p18) target = $region8
    $region5: #{tpu_custom_call.1} parent=1 // loop_body
      %s22 = ssub.s32 %s17, 1
      %s23 = ssub.s32 %s17, 2
      %s24 = sadd.s32 %s17, 1
      %s25 = ssub.s32 %s17, %s24
      %p26 = scmp.eq.s32.totalorder %s25, 0
      %s28 = sadd.s32 %s27, 1
      %s29 = scalar_select %p26, %s27, %s28
      %p32 = pneg %p26
      %p33 = scmp.eq.s32.totalorder %s17, 1
      %p34 = por %p32, %p33
      %p35 = scmp.ne.s32.totalorder %s27, %s30
      %p36 = scmp.eq.s32.totalorder %s17, 0
      %p37 = por %p35, %p36
      %p38 = scmp.ne.s32.totalorder %s27, %s30
      %p39 = scmp.eq.s32.totalorder %s22, 1
      %p40 = por %p38, %p39
      %p41 = scmp.ne.s32.totalorder %s30, %s31
      %p42 = scmp.eq.s32.totalorder %s22, 0
      %p43 = por %p41, %p42
      %p44 = scmp.ne.s32.totalorder %s30, %s31
      %p45 = scmp.eq.s32.totalorder %s23, 1
      %p46 = por %p44, %p45
      %p48 = scmp.ne.s32.totalorder %s31, %s47
      %p49 = scmp.eq.s32.totalorder %s23, 0
      %p50 = por %p48, %p49
      %s52 = sadd.s32 %s51, 1
      %p55 = scmp.eq.s32.totalorder %s17, 1
      %p56 = scmp.ne.s32.totalorder %s51, %s53
      %p57 = scmp.eq.s32.totalorder %s17, 0
      %p58 = por %p56, %p57
      %p59 = scmp.ne.s32.totalorder %s51, %s53
      %p60 = scmp.eq.s32.totalorder %s22, 1
      %p61 = por %p59, %p60
      %p62 = scmp.ne.s32.totalorder %s53, %s54
      %p63 = scmp.eq.s32.totalorder %s22, 0
      %p64 = por %p62, %p63
      %p65 = scmp.ne.s32.totalorder %s53, %s54
      %p66 = scmp.eq.s32.totalorder %s23, 1
      %p67 = por %p65, %p66
      %p69 = scmp.ne.s32.totalorder %s54, %s68
      %p70 = scmp.eq.s32.totalorder %s23, 0
      %p71 = por %p69, %p70
      %s73 = sadd.s32 %s72, 1
      %p76 = scmp.eq.s32.totalorder %s17, 1
      %p77 = scmp.ne.s32.totalorder %s72, %s74
      %p78 = scmp.eq.s32.totalorder %s17, 0
      %p79 = por %p77, %p78
      %p80 = scmp.ne.s32.totalorder %s72, %s74
      %p81 = scmp.eq.s32.totalorder %s22, 1
      %p82 = por %p80, %p81
      %p83 = scmp.ne.s32.totalorder %s74, %s75
      %p84 = scmp.eq.s32.totalorder %s22, 0
      %p85 = por %p83, %p84
      %p86 = scmp.ne.s32.totalorder %s74, %s75
      %p87 = scmp.eq.s32.totalorder %s23, 1
      %p88 = por %p86, %p87
      %p90 = scmp.ne.s32.totalorder %s75, %s89
      %p91 = scmp.eq.s32.totalorder %s23, 0
      %p92 = por %p90, %p91
      %s93 = ssub.s32 %s17, %s24
      %p94 = scmp.eq.s32.totalorder %s93, 0
      %s96 = sadd.s32 %s95, 1
      %s97 = scalar_select %p94, %s95, %s96
      %p100 = pneg %p94
      %p101 = scmp.eq.s32.totalorder %s17, 1
      %p102 = por %p100, %p101
      %p103 = scmp.ne.s32.totalorder %s95, %s98
      %p104 = scmp.eq.s32.totalorder %s17, 0
      %p105 = por %p103, %p104
      %p106 = scmp.ne.s32.totalorder %s95, %s98
      %p107 = scmp.eq.s32.totalorder %s22, 1
      %p108 = por %p106, %p107
      %p109 = scmp.ne.s32.totalorder %s98, %s99
      %p110 = scmp.eq.s32.totalorder %s22, 0
      %p111 = por %p109, %p110
      %p112 = scmp.ne.s32.totalorder %s98, %s99
      %p113 = scmp.eq.s32.totalorder %s23, 1
      %p114 = por %p112, %p113
      %p116 = scmp.ne.s32.totalorder %s99, %s115
      %p117 = scmp.eq.s32.totalorder %s23, 0
      %p118 = por %p116, %p117
      %s119 = ssub.s32 %s17, %s24
      %p120 = scmp.eq.s32.totalorder %s119, 0
      %s122 = sadd.s32 %s121, 1
      %s123 = scalar_select %p120, %s121, %s122
      %p126 = pneg %p120
      %p127 = scmp.eq.s32.totalorder %s17, 1
      %p128 = por %p126, %p127
      %p129 = scmp.ne.s32.totalorder %s121, %s124
      %p130 = scmp.eq.s32.totalorder %s17, 0
      %p131 = por %p129, %p130
      %p132 = scmp.ne.s32.totalorder %s121, %s124
      %p133 = scmp.eq.s32.totalorder %s22, 1
      %p134 = por %p132, %p133
      %p135 = scmp.ne.s32.totalorder %s124, %s125
      %p136 = scmp.eq.s32.totalorder %s22, 0
      %p137 = por %p135, %p136
      %p138 = scmp.ne.s32.totalorder %s124, %s125
      %p139 = scmp.eq.s32.totalorder %s23, 1
      %p140 = por %p138, %p139
      %p142 = scmp.ne.s32.totalorder %s125, %s141
      %p143 = scmp.eq.s32.totalorder %s23, 0
      %p144 = por %p142, %p143
      %p145 = scmp.le.s32.totalorder 1, %s17
      %p146 = scmp.lt.s32.totalorder %s17, 3
      %p147 = pnand %p145, %p146
      %p148 = pneg %p147
      // Predicated region
      $region9: #{tpu_custom_call.1} parent=5 // pred_check
        _
      $region10: #{tpu_custom_call.1} parent=5 // pred_check_branch
        %150 = sbr.rel (%p147) target = $region12
      $region11: #{tpu_custom_call.1} parent=5 // pred_region
        %s151 = ssub.s32 %s17, 1
        // Predicated region
        $region13: #{tpu_custom_call.1} parent=11 // pred_check
          %p152 = pneg %p64
        $region14: #{tpu_custom_call.1} parent=11 // pred_check_branch
          %154 = sbr.rel (%p152) target = $region16
        $region15: #{tpu_custom_call.1} parent=11 // pred_region
          _
        $region16: #{tpu_custom_call.1} parent=11 // pred_fallthru
          _
        // Predicated region
        $region17: #{tpu_custom_call.1} parent=11 // pred_check
          %p155 = pneg %p85
        $region18: #{tpu_custom_call.1} parent=11 // pred_check_branch
          %157 = sbr.rel (%p155) target = $region20
        $region19: #{tpu_custom_call.1} parent=11 // pred_region
          _
        $region20: #{tpu_custom_call.1} parent=11 // pred_fallthru
          _
      $region12: #{tpu_custom_call.1} parent=5 // pred_fallthru
        _
      %p158 = scmp.lt.s32.totalorder %s17, 2
      // Predicated region
      $region21: #{tpu_custom_call.1} parent=5 // pred_check
        %p159 = pneg %p158
      $region22: #{tpu_custom_call.1} parent=5 // pred_check_branch
        %161 = sbr.rel (%p159) target = $region24
      $region23: #{tpu_custom_call.1} parent=5 // pred_region
        // Predicated region
        $region25: #{tpu_custom_call.1} parent=23 // pred_check
          %p162 = pneg %p37
        $region26: #{tpu_custom_call.1} parent=23 // pred_check_branch
          %164 = sbr.rel (%p162) target = $region28
        $region27: #{tpu_custom_call.1} parent=23 // pred_region
          %p165 = scmp.lt.s32.totalorder %s17, 1
          %s166 = scalar_select %p165, %s17, 1
          %s167 = smul.addr %s166, 16
          %s168 = smul.addr %s167, 8
          %s169 = scalar_lea.vmem %s0, %s168
        $region28: #{tpu_custom_call.1} parent=23 // pred_fallthru
          _
      $region24: #{tpu_custom_call.1} parent=5 // pred_fallthru
        _
      %p170 = scmp.le.s32.totalorder 1, %s17
      %p171 = scmp.lt.s32.totalorder %s17, 3
      %p172 = pnand %p170, %p171
      %p173 = pneg %p172
      // Predicated region
      $region29: #{tpu_custom_call.1} parent=5 // pred_check
        _
      $region30: #{tpu_custom_call.1} parent=5 // pred_check_branch
        %175 = sbr.rel (%p172) target = $region32
      $region31: #{tpu_custom_call.1} parent=5 // pred_region
        %s176 = ssub.s32 %s17, 1
        %p177 = scmp.lt.s32.totalorder %s22, 1
        %s178 = scalar_select %p177, %s22, 1
        %s179 = smul.addr %s178, 16
        %s180 = smul.addr %s179, 8
        %s181 = scalar_lea.vmem %s0, %s180
        %p182 = pneg %p43
        %p183 = pneg %p40
        %p184 = pneg %p64
        %p185 = pneg %p61
        %p186 = pneg %p85
        %p187 = pneg %p82
        %p188 = pneg %p111
        %p189 = pneg %p108
        %s190 = sand.u32 %s98, 1
        %s191 = scalar_lea.sflag [#allocation3], %s190
        %s192 = sand.u32 %s98, 1
        %s193 = smul.addr %s192, 128
        %s194 = scalar_lea.vmem [#allocation2], %s193
        %p195 = pneg %p137
        %p196 = pneg %p134
        %s197 = sand.u32 %s124, 1
        %s198 = scalar_lea.sflag [#allocation5], %s197
        %s199 = sand.u32 %s124, 1
        %s200 = smul.addr %s199, 128
        %s201 = scalar_lea.vmem [#allocation4], %s200
        %p202 = scmp.lt.s32.totalorder %s22, 1
        %s203 = scalar_select %p202, %s22, 1
        %s204 = smul.addr %s203, 16
        %s205 = smul.addr %s204, 8
        %s206 = scalar_lea.vmem %s0, %s205
        %v207 = vld [vmem:[%s206] sm:$0xff]
        %v208 = vld [vmem:[%s206 + $0x8] sm:$0xff]
        %v209 = vld [vmem:[%s206 + $0x10] sm:$0xff]
        %v210 = vld [vmem:[%s206 + $0x18] sm:$0xff]
        %v211 = vld [vmem:[%s206 + $0x20] sm:$0xff]
        %v212 = vld [vmem:[%s206 + $0x28] sm:$0xff]
        %v213 = vld [vmem:[%s206 + $0x30] sm:$0xff]
        %v214 = vld [vmem:[%s206 + $0x38] sm:$0xff]
        %v215 = vld [vmem:[%s206 + $0x40] sm:$0xff]
        %v216 = vld [vmem:[%s206 + $0x48] sm:$0xff]
        %v217 = vld [vmem:[%s206 + $0x50] sm:$0xff]
        %v218 = vld [vmem:[%s206 + $0x58] sm:$0xff]
        %v219 = vld [vmem:[%s206 + $0x60] sm:$0xff]
        %v220 = vld [vmem:[%s206 + $0x68] sm:$0xff]
        %v221 = vld [vmem:[%s206 + $0x70] sm:$0xff]
        %v222 = vld [vmem:[%s206 + $0x78] sm:$0xff]
        %v223 = vld [vmem:[%s1] sm:$0xff]
        %v224 = vld [vmem:[%s1 + $0x8] sm:$0xff]
        %v225 = vld [vmem:[%s1 + $0x10] sm:$0xff]
        %v226 = vld [vmem:[%s1 + $0x18] sm:$0xff]
        %v227 = vld [vmem:[%s1 + $0x20] sm:$0xff]
        %v228 = vld [vmem:[%s1 + $0x28] sm:$0xff]
        %v229 = vld [vmem:[%s1 + $0x30] sm:$0xff]
        %v230 = vld [vmem:[%s1 + $0x38] sm:$0xff]
        %v231 = vld [vmem:[%s2] sm:$0x3]
        %v233 = vlaneseq
        %v234 = vshrl.u32 %v233, 7
        %v235 = vsub.s32 0, %v234
        %v236 = vrot.slane %v231, %v235
        %v237 = vlaneseq
        %v238 = vshrl.u32 %v237, 7
        %v239 = vsub.s32 1, %v238
        %v240 = vrot.slane %v231, %v239
        %vm243 = vcmask 261120
        %v245 = vsel %vm243, %v207, 0
        %v248 = vsel %vm243, %v208, 0
        %v251 = vsel %vm243, %v209, 0
        %v254 = vsel %vm243, %v210, 0
        %v257 = vsel %vm243, %v211, 0
        %v260 = vsel %vm243, %v212, 0
        %v263 = vsel %vm243, %v213, 0
        %v266 = vsel %vm243, %v214, 0
        %v269 = vsel %vm243, %v215, 0
        %v272 = vsel %vm243, %v216, 0
        %v275 = vsel %vm243, %v217, 0
        %v278 = vsel %vm243, %v218, 0
        %v281 = vsel %vm243, %v219, 0
        %v284 = vsel %vm243, %v220, 0
        %v287 = vsel %vm243, %v221, 0
        %v290 = vsel %vm243, %v222, 0
        %292 = vmatprep.subr.mxu0 0.0
        %293 = vmatpush1.msra.mxu0 0.0
        %294 = vmatprep.subr.mxu0 0.0
        %295 = vmatpush1.msra.mxu0 0.0
        %296 = vmatprep.subr.mxu0 0.0
        %297 = vmatpush1.msra.mxu0 0.0
        %298 = vmatprep.subr.mxu0 0.0
        %299 = vmatpush1.msra.mxu0 0.0
        %300 = vmatprep.subr.mxu0 0.0
        %301 = vmatpush1.msra.mxu0 0.0
        %302 = vmatprep.subr.mxu0 0.0
        %303 = vmatpush1.msra.mxu0 0.0
        %304 = vmatprep.subr.mxu0 0.0
        %305 = vmatpush1.msra.mxu0 0.0
        %306 = vmatprep.subr.mxu0 0.0
        %307 = vmatpush1.msra.mxu0 0.0
        %308 = vmatprep.subr.mxu0 0.0
        %309 = vmatpush1.msra.mxu0 0.0
        %310 = vmatprep.subr.mxu0 0.0
        %311 = vmatpush1.msra.mxu0 0.0
        %312 = vmatprep.subr.mxu0 0.0
        %313 = vmatpush1.msra.mxu0 0.0
        %314 = vmatprep.subr.mxu0 0.0
        %315 = vmatpush1.msra.mxu0 0.0
        %316 = vmatprep.subr.mxu0 %v230
        %317 = vmatpush1.msra.mxu0 %v229
        %318 = vmatprep.subr.mxu0 %v228
        %319 = vmatpush1.msra.mxu0 %v227
        %320 = vmatprep.subr.mxu0 %v226
        %321 = vmatpush1.msra.mxu0 %v225
        %322 = vmatprep.subr.mxu0 %v224
        %323 = vmatpush1.msra.mxu0 %v223
        %324 = vmatprep.subr.mxu0 0.0
        %325 = vmatpush2.msra.mxu0 0.0
        %326 = vmatprep.subr.mxu0 0.0
        %327 = vmatpush2.msra.mxu0 0.0
        %328 = vmatprep.subr.mxu0 0.0
        %329 = vmatpush2.msra.mxu0 0.0
        %330 = vmatprep.subr.mxu0 0.0
        %331 = vmatpush2.msra.mxu0 0.0
        %332 = vmatprep.subr.mxu0 0.0
        %333 = vmatpush2.msra.mxu0 0.0
        %334 = vmatprep.subr.mxu0 0.0
        %335 = vmatpush2.msra.mxu0 0.0
        %336 = vmatprep.subr.mxu0 0.0
        %337 = vmatpush2.msra.mxu0 0.0
        %338 = vmatprep.subr.mxu0 0.0
        %339 = vmatpush2.msra.mxu0 0.0
        %340 = vmatprep.subr.mxu0 0.0
        %341 = vmatpush2.msra.mxu0 0.0
        %342 = vmatprep.subr.mxu0 0.0
        %343 = vmatpush2.msra.mxu0 0.0
        %344 = vmatprep.subr.mxu0 0.0
        %345 = vmatpush2.msra.mxu0 0.0
        %346 = vmatprep.subr.mxu0 0.0
        %347 = vmatpush2.msra.mxu0 0.0
        %348 = vmatprep.subr.mxu0 0.0
        %349 = vmatpush2.msra.mxu0 0.0
        %350 = vmatprep.subr.mxu0 0.0
        %351 = vmatpush2.msra.mxu0 0.0
        %352 = vmatprep.subr.mxu0 0.0
        %353 = vmatpush2.msra.mxu0 0.0
        %354 = vmatprep.subr.mxu0 0.0
        %355 = vmatpush2.msra.mxu0 0.0
        %356 = vmatprep.mubr.f32.mxu0 0.0
        %357 = vmatmul.mubr.f32.gmra.mxu0 %v245
        %v358 = vpop.f32.mrf.mxu0
        %v359 = vadd.f32 %v236, %v358
        %v360 = vpop.f32.mrf.mxu0
        %v361 = vadd.f32 %v240, %v360
        %362 = vmatprep.mubr.f32.mxu0 0.0
        %363 = vmatmul.mubr.f32.gmra.mxu0 %v248
        %v364 = vpop.f32.mrf.mxu0
        %v365 = vadd.f32 %v236, %v364
        %v366 = vpop.f32.mrf.mxu0
        %v367 = vadd.f32 %v240, %v366
        %368 = vmatprep.mubr.f32.mxu0 0.0
        %369 = vmatmul.mubr.f32.gmra.mxu0 %v251
        %v370 = vpop.f32.mrf.mxu0
        %v371 = vadd.f32 %v236, %v370
        %v372 = vpop.f32.mrf.mxu0
        %v373 = vadd.f32 %v240, %v372
        %374 = vmatprep.mubr.f32.mxu0 0.0
        %375 = vmatmul.mubr.f32.gmra.mxu0 %v254
        %v376 = vpop.f32.mrf.mxu0
        %v377 = vadd.f32 %v236, %v376
        %v378 = vpop.f32.mrf.mxu0
        %v379 = vadd.f32 %v240, %v378
        %380 = vmatprep.mubr.f32.mxu0 0.0
        %381 = vmatmul.mubr.f32.gmra.mxu0 %v257
        %v382 = vpop.f32.mrf.mxu0
        %v383 = vadd.f32 %v236, %v382
        %v384 = vpop.f32.mrf.mxu0
        %v385 = vadd.f32 %v240, %v384
        %386 = vmatprep.mubr.f32.mxu0 0.0
        %387 = vmatmul.mubr.f32.gmra.mxu0 %v260
        %v388 = vpop.f32.mrf.mxu0
        %v389 = vadd.f32 %v236, %v388
        %v390 = vpop.f32.mrf.mxu0
        %v391 = vadd.f32 %v240, %v390
        %392 = vmatprep.mubr.f32.mxu0 0.0
        %393 = vmatmul.mubr.f32.gmra.mxu0 %v263
        %v394 = vpop.f32.mrf.mxu0
        %v395 = vadd.f32 %v236, %v394
        %v396 = vpop.f32.mrf.mxu0
        %v397 = vadd.f32 %v240, %v396
        %398 = vmatprep.mubr.f32.mxu0 0.0
        %399 = vmatmul.mubr.f32.gmra.mxu0 %v266
        %v400 = vpop.f32.mrf.mxu0
        %v401 = vadd.f32 %v236, %v400
        %v402 = vpop.f32.mrf.mxu0
        %v403 = vadd.f32 %v240, %v402
        %404 = vmatprep.mubr.f32.mxu0 0.0
        %405 = vmatmul.mubr.f32.gmra.mxu0 %v269
        %v406 = vpop.f32.mrf.mxu0
        %v407 = vadd.f32 %v236, %v406
        %v408 = vpop.f32.mrf.mxu0
        %v409 = vadd.f32 %v240, %v408
        %410 = vmatprep.mubr.f32.mxu0 0.0
        %411 = vmatmul.mubr.f32.gmra.mxu0 %v272
        %v412 = vpop.f32.mrf.mxu0
        %v413 = vadd.f32 %v236, %v412
        %v414 = vpop.f32.mrf.mxu0
        %v415 = vadd.f32 %v240, %v414
        %416 = vmatprep.mubr.f32.mxu0 0.0
        %417 = vmatmul.mubr.f32.gmra.mxu0 %v275
        %v418 = vpop.f32.mrf.mxu0
        %v419 = vadd.f32 %v236, %v418
        %v420 = vpop.f32.mrf.mxu0
        %v421 = vadd.f32 %v240, %v420
        %422 = vmatprep.mubr.f32.mxu0 0.0
        %423 = vmatmul.mubr.f32.gmra.mxu0 %v278
        %v424 = vpop.f32.mrf.mxu0
        %v425 = vadd.f32 %v236, %v424
        %v426 = vpop.f32.mrf.mxu0
        %v427 = vadd.f32 %v240, %v426
        %428 = vmatprep.mubr.f32.mxu0 0.0
        %429 = vmatmul.mubr.f32.gmra.mxu0 %v281
        %v430 = vpop.f32.mrf.mxu0
        %v431 = vadd.f32 %v236, %v430
        %v432 = vpop.f32.mrf.mxu0
        %v433 = vadd.f32 %v240, %v432
        %434 = vmatprep.mubr.f32.mxu0 0.0
        %435 = vmatmul.mubr.f32.gmra.mxu0 %v284
        %v436 = vpop.f32.mrf.mxu0
        %v437 = vadd.f32 %v236, %v436
        %v438 = vpop.f32.mrf.mxu0
        %v439 = vadd.f32 %v240, %v438
        %440 = vmatprep.mubr.f32.mxu0 0.0
        %441 = vmatmul.mubr.f32.gmra.mxu0 %v287
        %v442 = vpop.f32.mrf.mxu0
        %v443 = vadd.f32 %v236, %v442
        %v444 = vpop.f32.mrf.mxu0
        %v445 = vadd.f32 %v240, %v444
        %446 = vmatprep.mubr.f32.mxu0 0.0
        %447 = vmatmul.mubr.f32.gmra.mxu0 %v290
        %v448 = vpop.f32.mrf.mxu0
        %v449 = vadd.f32 %v236, %v448
        %v450 = vpop.f32.mrf.mxu0
        %v451 = vadd.f32 %v240, %v450
        %452 = vdwg.mxu0
        %453 = vxpose.xlu0.b32.start [1/16] %v359, 128
        %454 = vxpose.xlu0.b32.cont [2/16] %v365, 128
        %455 = vxpose.xlu0.b32.cont [3/16] %v371, 128
        %456 = vxpose.xlu0.b32.cont [4/16] %v377, 128
        %457 = vxpose.xlu0.b32.cont [5/16] %v383, 128
        %458 = vxpose.xlu0.b32.cont [6/16] %v389, 128
        %459 = vxpose.xlu0.b32.cont [7/16] %v395, 128
        %460 = vxpose.xlu0.b32.cont [8/16] %v401, 128
        %461 = vxpose.xlu0.b32.cont [9/16] %v407, 128
        %462 = vxpose.xlu0.b32.cont [10/16] %v413, 128
        %463 = vxpose.xlu0.b32.cont [11/16] %v419, 128
        %464 = vxpose.xlu0.b32.cont [12/16] %v425, 128
        %465 = vxpose.xlu0.b32.cont [13/16] %v431, 128
        %466 = vxpose.xlu0.b32.cont [14/16] %v437, 128
        %467 = vxpose.xlu0.b32.cont [15/16] %v443, 128
        %468 = vxpose.xlu0.b32.end [16/16] %v449, 128
        %v469 = vpop.trf.xlu0
        %v470 = vpop.trf.xlu0
        %v471 = vpop.trf.xlu0
        %v472 = vpop.trf.xlu0
        %v473 = vpop.trf.xlu0
        %v474 = vpop.trf.xlu0
        %v475 = vpop.trf.xlu0
        %v476 = vpop.trf.xlu0
        %v477 = vpop.trf.xlu0
        %v478 = vpop.trf.xlu0
        %v479 = vpop.trf.xlu0
        %v480 = vpop.trf.xlu0
        %v481 = vpop.trf.xlu0
        %v482 = vpop.trf.xlu0
        %v483 = vpop.trf.xlu0
        %v484 = vpop.trf.xlu0
        %485 = vst [vmem:[%s194] sm:$0xff] %v469
        %486 = vst [vmem:[%s194 + $0x8] sm:$0xff] %v470
        %487 = vst [vmem:[%s194 + $0x10] sm:$0xff] %v471
        %488 = vst [vmem:[%s194 + $0x18] sm:$0xff] %v472
        %489 = vst [vmem:[%s194 + $0x20] sm:$0xff] %v473
        %490 = vst [vmem:[%s194 + $0x28] sm:$0xff] %v474
        %491 = vst [vmem:[%s194 + $0x30] sm:$0xff] %v475
        %492 = vst [vmem:[%s194 + $0x38] sm:$0xff] %v476
        %493 = vst [vmem:[%s194 + $0x40] sm:$0xff] %v477
        %494 = vst [vmem:[%s194 + $0x48] sm:$0xff] %v478
        %495 = vst [vmem:[%s194 + $0x50] sm:$0xff] %v479
        %496 = vst [vmem:[%s194 + $0x58] sm:$0xff] %v480
        %497 = vst [vmem:[%s194 + $0x60] sm:$0xff] %v481
        %498 = vst [vmem:[%s194 + $0x68] sm:$0xff] %v482
        %499 = vst [vmem:[%s194 + $0x70] sm:$0xff] %v483
        %500 = vst [vmem:[%s194 + $0x78] sm:$0xff] %v484
        %501 = vst [vmem:[%s201] sm:$0xff] %v361
        %502 = vst [vmem:[%s201 + $0x8] sm:$0xff] %v367
        %503 = vst [vmem:[%s201 + $0x10] sm:$0xff] %v373
        %504 = vst [vmem:[%s201 + $0x18] sm:$0xff] %v379
        %505 = vst [vmem:[%s201 + $0x20] sm:$0xff] %v385
        %506 = vst [vmem:[%s201 + $0x28] sm:$0xff] %v391
        %507 = vst [vmem:[%s201 + $0x30] sm:$0xff] %v397
        %508 = vst [vmem:[%s201 + $0x38] sm:$0xff] %v403
        %509 = vst [vmem:[%s201 + $0x40] sm:$0xff] %v409
        %510 = vst [vmem:[%s201 + $0x48] sm:$0xff] %v415
        %511 = vst [vmem:[%s201 + $0x50] sm:$0xff] %v421
        %512 = vst [vmem:[%s201 + $0x58] sm:$0xff] %v427
        %513 = vst [vmem:[%s201 + $0x60] sm:$0xff] %v433
        %514 = vst [vmem:[%s201 + $0x68] sm:$0xff] %v439
        %515 = vst [vmem:[%s201 + $0x70] sm:$0xff] %v445
        %516 = vst [vmem:[%s201 + $0x78] sm:$0xff] %v451
        %s517 = sand.u32 %s98, 1
        %s518 = scalar_lea.sflag [#allocation3], %s517
        %s519 = sand.u32 %s98, 1
        %s520 = smul.addr %s519, 128
        %s521 = scalar_lea.vmem [#allocation2], %s520
        %s522 = sand.u32 %s124, 1
        %s523 = scalar_lea.sflag [#allocation5], %s522
        %s524 = sand.u32 %s124, 1
        %s525 = smul.addr %s524, 128
        %s526 = scalar_lea.vmem [#allocation4], %s525
        // Predicated region
        $region33: #{tpu_custom_call.1} parent=31 // pred_check
          %p527 = pneg %p108
        $region34: #{tpu_custom_call.1} parent=31 // pred_check_branch
          %529 = sbr.rel (%p527) target = $region36
        $region35: #{tpu_custom_call.1} parent=31 // pred_region
          %s531 = ssub.s32 2048, 2048
          %532 = vsyncadd %s518, %s531
          %s533 = smul.addr %s22, 16
          %s534 = smul.addr %s533, 128
          %s535 = scalar_lea.hbm %s3, %s534
          %s536 = sshll.u32 %s521, 4
          %s537 = int_to_ptr.vmem [resolvable:$true] %s536
          %542 = dma.vmem_to_hbm [thread:$0]  %s537, 2048, %s535, %s518, 128, 128, 8
        $region36: #{tpu_custom_call.1} parent=31 // pred_fallthru
          _
        // Predicated region
        $region37: #{tpu_custom_call.1} parent=31 // pred_check
          %p543 = pneg %p134
        $region38: #{tpu_custom_call.1} parent=31 // pred_check_branch
          %545 = sbr.rel (%p543) target = $region40
        $region39: #{tpu_custom_call.1} parent=31 // pred_region
          %s547 = ssub.s32 2048, 2048
          %548 = vsyncadd %s523, %s547
          %s549 = smul.addr %s22, 16
          %s550 = smul.addr %s549, 128
          %s551 = scalar_lea.hbm %s4, %s550
          %s552 = sshll.u32 %s526, 4
          %s553 = int_to_ptr.vmem [resolvable:$true] %s552
          %558 = dma.vmem_to_hbm [thread:$0]  %s553, 2048, %s551, %s523, 128, 128, 8
        $region40: #{tpu_custom_call.1} parent=31 // pred_fallthru
          _
      $region32: #{tpu_custom_call.1} parent=5 // pred_fallthru
        _
      %p559 = scmp.le.s32.totalorder 2, %s17
      // Predicated region
      $region41: #{tpu_custom_call.1} parent=5 // pred_check
        %p560 = pneg %p559
      $region42: #{tpu_custom_call.1} parent=5 // pred_check_branch
        %562 = sbr.rel (%p560) target = $region44
      $region43: #{tpu_custom_call.1} parent=5 // pred_region
        %s563 = ssub.s32 %s17, 2
        // Predicated region
        $region45: #{tpu_custom_call.1} parent=43 // pred_check
          %p564 = pneg %p114
        $region46: #{tpu_custom_call.1} parent=43 // pred_check_branch
          %566 = sbr.rel (%p564) target = $region48
        $region47: #{tpu_custom_call.1} parent=43 // pred_region
          %s567 = sand.u32 %s99, 1
          %s568 = scalar_lea.sflag [#allocation3], %s567
          %s569 = sand.u32 %s99, 1
          %s570 = smul.addr %s569, 128
          %s571 = scalar_lea.vmem [#allocation2], %s570
          %572 = dma.done %s568, 2048
        $region48: #{tpu_custom_call.1} parent=43 // pred_fallthru
          _
        // Predicated region
        $region49: #{tpu_custom_call.1} parent=43 // pred_check
          %p573 = pneg %p140
        $region50: #{tpu_custom_call.1} parent=43 // pred_check_branch
          %575 = sbr.rel (%p573) target = $region52
        $region51: #{tpu_custom_call.1} parent=43 // pred_region
          %s576 = sand.u32 %s125, 1
          %s577 = scalar_lea.sflag [#allocation5], %s576
          %s578 = sand.u32 %s125, 1
          %s579 = smul.addr %s578, 128
          %s580 = scalar_lea.vmem [#allocation4], %s579
          %581 = dma.done %s577, 2048
        $region52: #{tpu_custom_call.1} parent=43 // pred_fallthru
          _
      $region44: #{tpu_custom_call.1} parent=5 // pred_fallthru
        _
    $region6: #{tpu_custom_call.1} parent=1 // loop_footer
      %s21 = sadd.s32 1, %s17
    $region7: #{tpu_custom_call.1} parent=1 // loop_footer_branch
      %16 = sbr.rel target = $region3
    $region8: #{tpu_custom_call.1} parent=1 // loop_exit
      _
    %582 = vsyncpa [#allocation3], 1
    %s583 = scalar_lea.sflag [#allocation3], 1
    %584 = vsyncpa %s583, 1
    %585 = vsyncpa [#allocation5], 1
    %s586 = scalar_lea.sflag [#allocation5], 1
    %587 = vsyncpa %s586, 1

</llo_original>
